<compile_context>
chip_gen: v6e
topology: v6e:2x2x1
jax: 0.10.0
libtpu: 0.0.40
codegen_flags: <defaults>
</compile_context>

<pallas_src>
import numpy as np
import jax
import jax.numpy as jnp
from jax.experimental import pallas as pl
from jax.experimental.pallas import tpu as pltpu


# ---------------------------------------------------------------------------
# Small helpers
# ---------------------------------------------------------------------------
def _cdiv(a: int, b: int) -> int:
    return -(-a // b)


def _round_up(a: int, b: int) -> int:
    return _cdiv(a, b) * b


def _balanced_tile(dim: int, max_tile: int, align: int) -> int:
    """Largest aligned tile <= max_tile chosen so padding waste stays < `align`."""
    if dim <= max_tile:
        return _round_up(dim, align)
    n_chunks = _cdiv(dim, max_tile)
    return _round_up(_cdiv(dim, n_chunks), align)


def _vmem_capacity_bytes() -> int:
    try:
        return int(pltpu.get_tpu_info().vmem_capacity_bytes)
    except Exception:
        return 64 * 1024 * 1024  # conservative fallback: v7x per-TensorCore VMEM


# ---------------------------------------------------------------------------
# Kernels
#   direct variants: f32 output block is K-resident -> accumulate in place.
#   acc variants   : low-precision output -> f32 VMEM scratch accumulator.
# ---------------------------------------------------------------------------
def _linear_kernel_bias_direct(x_ref, w_ref, b_ref, o_ref):
    k = pl.program_id(2)
    part = jnp.dot(x_ref[...], w_ref[...], preferred_element_type=jnp.float32)

    @pl.when(k == 0)
    def _():
        o_ref[...] = part

    @pl.when(k > 0)
    def _():
        o_ref[...] = o_ref[...] + part

    @pl.when(k == pl.num_programs(2) - 1)
    def _():
        o_ref[...] = o_ref[...] + b_ref[...]


def _linear_kernel_nobias_direct(x_ref, w_ref, o_ref):
    k = pl.program_id(2)
    part = jnp.dot(x_ref[...], w_ref[...], preferred_element_type=jnp.float32)

    @pl.when(k == 0)
    def _():
        o_ref[...] = part

    @pl.when(k > 0)
    def _():
        o_ref[...] = o_ref[...] + part


def _linear_kernel_bias_acc(x_ref, w_ref, b_ref, o_ref, acc_ref):
    k = pl.program_id(2)

    @pl.when(k == 0)
    def _():
        acc_ref[...] = jnp.zeros_like(acc_ref)

    acc_ref[...] += jnp.dot(x_ref[...], w_ref[...],
                            preferred_element_type=jnp.float32)

    @pl.when(k == pl.num_programs(2) - 1)
    def _():
        o_ref[...] = (acc_ref[...] + b_ref[...]).astype(o_ref.dtype)


def _linear_kernel_nobias_acc(x_ref, w_ref, o_ref, acc_ref):
    k = pl.program_id(2)

    @pl.when(k == 0)
    def _():
        acc_ref[...] = jnp.zeros_like(acc_ref)

    acc_ref[...] += jnp.dot(x_ref[...], w_ref[...],
                            preferred_element_type=jnp.float32)

    @pl.when(k == pl.num_programs(2) - 1)
    def _():
        o_ref[...] = acc_ref[...].astype(o_ref.dtype)


# ---------------------------------------------------------------------------
# Parameter preparation (run ONCE, outside the hot path)
# ---------------------------------------------------------------------------
def prepare_linear_params(weight, bias=None, *, tile_n=1024, tile_k=1024,
                          compute_dtype=None):
    """weight: (out_features, in_features); bias: (out_features,) or None.

    Pre-transposes the weight to (K, N), pads K/N to lane-friendly tile multiples,
    and (optionally) casts to a bf16 compute dtype — all once, so repeated forward
    calls pay zero extra HBM passes for weight prep.
    """
    N, K = weight.shape
    w_dtype = jnp.dtype(compute_dtype) if compute_dtype is not None else weight.dtype

    tn = _balanced_tile(N, tile_n, 128)
    tk = _balanced_tile(K, tile_k, 128)
    Np, Kp = _round_up(N, tn), _round_up(K, tk)

    w_kn = jnp.transpose(weight.astype(w_dtype))            # (K, N), MXU layout
    if (Kp, Np) != (K, N):
        w_kn = jnp.pad(w_kn, ((0, Kp - K), (0, Np - N)))     # zero-pad: exact

    if bias is not None:
        b_1n = jnp.asarray(bias, jnp.float32)
        if Np != N:
            b_1n = jnp.pad(b_1n, (0, Np - N))
        b_1n = b_1n.reshape(1, Np)
    else:
        b_1n = None

    return {"w_kn": w_kn, "b_1n": b_1n, "n": N, "k": K,
            "tn": tn, "tk": tk, "compute_dtype": w_dtype}


# ---------------------------------------------------------------------------
# Forward pass
# ---------------------------------------------------------------------------
def linear_pallas_apply(x, params, *, tile_m=512, weight_buffer_count=2):
    """x: (*, in_features) -> (*, out_features) using pre-prepared params."""
    *lead, K = x.shape
    assert K == params["k"], (K, params["k"])

    w_kn, b_1n = params["w_kn"], params["b_1n"]
    N, tn, tk = params["n"], params["tn"], params["tk"]
    Kp, Np = w_kn.shape
    compute_dtype = params["compute_dtype"]
    has_bias = b_1n is not None

    x2 = x.reshape(-1, K)
    M = x2.shape[0]
    out_dtype = x.dtype
    direct = out_dtype == jnp.float32          # accumulate straight into o_ref

    # Sublane alignment: 8 for f32, 16 for bf16 (sublane packing).
    align_m = 16 if jnp.dtype(compute_dtype) == jnp.bfloat16 else 8
    tm = _balanced_tile(M, tile_m, align_m)
    Mp = _round_up(M, tm)

    xp = x2.astype(compute_dtype)
    if (Mp, Kp) != (M, K):
        xp = jnp.pad(xp, ((0, Mp - M), (0, Kp - K)))

    # v7x: if the M axis degenerates to 1 grid step, split N so a "parallel"
    # grid axis has extent >= 2 and both TensorCores are used (no-op on v5e/v6e).
    tn_eff = tn
    if Mp // tm == 1:
        while Np // tn_eff < 2 and tn_eff % 256 == 0:
            tn_eff //= 2

    grid = (Mp // tm, Np // tn_eff, Kp // tk)

    # Weight BlockSpec; optionally deepen its pipeline for small-M shapes where
    # the weight stream dominates HBM traffic.
    w_spec_kwargs = {}
    if weight_buffer_count > 2:
        w_spec_kwargs["pipeline_mode"] = pl.Buffered(weight_buffer_count)
    w_spec = pl.BlockSpec((tk, tn_eff), lambda i, j, k: (k, j), **w_spec_kwargs)

    in_specs = [pl.BlockSpec((tm, tk), lambda i, j, k: (i, k)),   # activations
                w_spec]                                           # weights (M-invariant)
    operands = [xp, w_kn]
    if has_bias:
        in_specs.append(pl.BlockSpec((1, tn_eff), lambda i, j, k: (0, j)))
        operands.append(b_1n)

    if direct:
        kernel = _linear_kernel_bias_direct if has_bias else _linear_kernel_nobias_direct
        scratch_shapes = []
    else:
        kernel = _linear_kernel_bias_acc if has_bias else _linear_kernel_nobias_acc
        scratch_shapes = [pltpu.VMEM((tm, tn_eff), jnp.float32)]

    # Explicit scoped-VMEM budget: double-buffered x/W/out (+ bias, + scratch),
    # with headroom, capped to ~75% of the detected per-core VMEM.
    isz_in = jnp.dtype(compute_dtype).itemsize
    isz_out = jnp.dtype(out_dtype).itemsize
    wbufs = max(2, weight_buffer_count)
    need = (2 * tm * tk * isz_in
            + wbufs * tk * tn_eff * isz_in
            + 2 * tm * tn_eff * isz_out)
    if has_bias:
        need += 2 * tn_eff * 4
    if not direct:
        need += tm * tn_eff * 4
    cap = _vmem_capacity_bytes()
    vmem_limit = min(max(need + (8 << 20), 32 << 20), int(0.75 * cap))
    vmem_limit = max(vmem_limit, need + (2 << 20))

    out = pl.pallas_call(
        kernel,
        out_shape=jax.ShapeDtypeStruct((Mp, Np), out_dtype),
        grid_spec=pltpu.PrefetchScalarGridSpec(
            num_scalar_prefetch=0,
            grid=grid,
            in_specs=in_specs,
            out_specs=pl.BlockSpec((tm, tn_eff), lambda i, j, k: (i, j)),
            scratch_shapes=scratch_shapes,
        ),
        compiler_params=pltpu.CompilerParams(
            dimension_semantics=("parallel", "parallel", "arbitrary"),
            vmem_limit_bytes=vmem_limit,
        ),
    )(*operands)

    return out[:M, :N].reshape(*lead, N)


def linear_pallas(x, weight, bias=None, **kwargs):
    """One-shot convenience wrapper (prep + apply). Prefer preparing once."""
    params = prepare_linear_params(weight, bias,
                                   compute_dtype=kwargs.pop("compute_dtype", None))
    return linear_pallas_apply(x, params, **kwargs)


# ---------------------------------------------------------------------------
# Parameter init matching the PyTorch module, and a pure-JAX reference
# ---------------------------------------------------------------------------
def init_linear(key, in_features, out_features, with_bias=True):
    kw, kb = jax.random.split(key)
    sf = 1.0 / np.sqrt(in_features)
    weight = sf * (2.0 * jax.random.uniform(kw, (out_features, in_features),
                                            dtype=jnp.float32) - 1.0)
    if with_bias:
        bias = sf * (2.0 * jax.random.uniform(kb, (out_features,),
                                              dtype=jnp.float32) - 1.0)
    else:
        bias = None
    return weight, bias


def _ref_linear(x, weight, bias):
    out = jnp.einsum('...i,ji->...j', x, weight)
    if bias is not None:
        out = out + bias
    return out


# ---------------------------------------------------------------------------
if __name__ == "__main__":
    key = jax.random.PRNGKey(0)
    k_x, k_p = jax.random.split(key)

    in_features, out_features = 32, 64
    x = jax.random.normal(k_x, (2, 8, in_features), dtype=jnp.float32)
    weight, bias = init_linear(k_p, in_features, out_features, with_bias=True)
    ref = jax.block_until_ready(_ref_linear(x, weight, bias))

    # f32 path (preserves the module's numerics), weight prepared once.
    params = prepare_linear_params(weight, bias)
    out = jax.block_until_ready(linear_pallas_apply(x, params))
    assert out.shape == (2, 8, out_features), out.shape
    np.testing.assert_allclose(np.asarray(out), np.asarray(ref), rtol=1e-3, atol=1e-3)

    # bias=None path (dedicated no-bias kernel, no zero-vector stream).
    params_nb = prepare_linear_params(weight, None)
    out_nb = jax.block_until_ready(linear_pallas_apply(x, params_nb))
    ref_nb = jax.block_until_ready(_ref_linear(x, weight, None))
    np.testing.assert_allclose(np.asarray(out_nb), np.asarray(ref_nb), rtol=1e-3, atol=1e-3)

    # bf16-fed MXU path (f32 accumulation) — faster, slightly looser numerics.
    params_bf16 = prepare_linear_params(weight, bias, compute_dtype=jnp.bfloat16)
    out_bf16 = jax.block_until_ready(linear_pallas_apply(x, params_bf16))
    np.testing.assert_allclose(np.asarray(out_bf16), np.asarray(ref), rtol=5e-2, atol=5e-2)

    # One-shot convenience wrapper.
    out_conv = jax.block_until_ready(linear_pallas(x, weight, bias))
    np.testing.assert_allclose(np.asarray(out_conv), np.asarray(ref), rtol=1e-3, atol=1e-3)

    print("KERNEL_OK")
</pallas_src>

<mosaic_0001>
module attributes {stable_mosaic.version = 11 : i64} {
  func.func @_linear_kernel_bias_direct(%arg0: i32, %arg1: i32, %arg2: i32, %arg3: memref<16x128xf32, #tpu.memory_space<vmem>>, %arg4: memref<128x128xf32, #tpu.memory_space<vmem>>, %arg5: memref<1x128xf32, #tpu.memory_space<vmem>>, %arg6: memref<16x128xf32, #tpu.memory_space<vmem>>) attributes {dimension_semantics = [#tpu.dimension_semantics<parallel>, #tpu.dimension_semantics<parallel>, #tpu.dimension_semantics<arbitrary>], iteration_bounds = array<i64: 1, 1, 1>, scalar_prefetch = 0 : i64, scratch_operands = 0 : i64, tpu.core_type = #tpu.core_type<tc>, window_params = [{transform_indices = @transform_0, window_bounds = array<i64: 16, 128>}, {transform_indices = @transform_1, window_bounds = array<i64: 128, 128>}, {transform_indices = @transform_2, window_bounds = array<i64: 1, 128>}, {transform_indices = @transform_3, window_bounds = array<i64: 16, 128>}]} {
    %c0 = arith.constant 0 : index
    %c0_0 = arith.constant 0 : index
    %0 = vector.load %arg3[%c0, %c0_0] : memref<16x128xf32, #tpu.memory_space<vmem>>, vector<16x128xf32>
    %c0_1 = arith.constant 0 : index
    %c0_2 = arith.constant 0 : index
    %1 = vector.load %arg4[%c0_1, %c0_2] : memref<128x128xf32, #tpu.memory_space<vmem>>, vector<128x128xf32>
    %cst = arith.constant dense<0.000000e+00> : vector<16x128xf32>
    %2 = tpu.matmul %0, %1, %cst {dimension_numbers = #tpu.dot_dimension_numbers<[1], [0], [0], [1], [0, 0, 1, 1], [], []>} : vector<16x128xf32>, vector<128x128xf32>, vector<16x128xf32> -> vector<16x128xf32>
    %c0_i32 = arith.constant 0 : i32
    %3 = arith.cmpi eq, %arg2, %c0_i32 : i32
    %4 = arith.extui %3 : i1 to i32
    %c0_i32_3 = arith.constant 0 : i32
    %5 = arith.cmpi ne, %4, %c0_i32_3 : i32
    scf.if %5 {
      %c0_8 = arith.constant 0 : index
      %c0_9 = arith.constant 0 : index
      %12 = vector.load %arg6[%c0_8, %c0_9] : memref<16x128xf32, #tpu.memory_space<vmem>>, vector<16x128xf32>
      tpu.vector_store %arg6[%c0_8, %c0_9], %2 {strides = array<i32>} : memref<16x128xf32, #tpu.memory_space<vmem>>, vector<16x128xf32>,
    } else {
    }
    %c0_i32_4 = arith.constant 0 : i32
    %6 = arith.cmpi sgt, %arg2, %c0_i32_4 : i32
    %7 = arith.extui %6 : i1 to i32
    %c0_i32_5 = arith.constant 0 : i32
    %8 = arith.cmpi ne, %7, %c0_i32_5 : i32
    scf.if %8 {
      %c0_8 = arith.constant 0 : index
      %c0_9 = arith.constant 0 : index
      %12 = vector.load %arg6[%c0_8, %c0_9] : memref<16x128xf32, #tpu.memory_space<vmem>>, vector<16x128xf32>
      %13 = arith.addf %12, %2 : vector<16x128xf32>
      %c0_10 = arith.constant 0 : index
      %c0_11 = arith.constant 0 : index
      %14 = vector.load %arg6[%c0_10, %c0_11] : memref<16x128xf32, #tpu.memory_space<vmem>>, vector<16x128xf32>
      tpu.vector_store %arg6[%c0_10, %c0_11], %13 {strides = array<i32>} : memref<16x128xf32, #tpu.memory_space<vmem>>, vector<16x128xf32>,
    } else {
    }
    %c0_i32_6 = arith.constant 0 : i32
    %9 = arith.cmpi eq, %arg2, %c0_i32_6 : i32
    %10 = arith.extui %9 : i1 to i32
    %c0_i32_7 = arith.constant 0 : i32
    %11 = arith.cmpi ne, %10, %c0_i32_7 : i32
    scf.if %11 {
      %c0_8 = arith.constant 0 : index
      %c0_9 = arith.constant 0 : index
      %12 = vector.load %arg6[%c0_8, %c0_9] : memref<16x128xf32, #tpu.memory_space<vmem>>, vector<16x128xf32>
      %c0_10 = arith.constant 0 : index
      %c0_11 = arith.constant 0 : index
      %13 = vector.load %arg5[%c0_10, %c0_11] : memref<1x128xf32, #tpu.memory_space<vmem>>, vector<1x128xf32>
      %14 = vector.broadcast %13 : vector<1x128xf32> to vector<16x128xf32>
      %15 = arith.addf %12, %14 : vector<16x128xf32>
      %c0_12 = arith.constant 0 : index
      %c0_13 = arith.constant 0 : index
      %16 = vector.load %arg6[%c0_12, %c0_13] : memref<16x128xf32, #tpu.memory_space<vmem>>, vector<16x128xf32>
      tpu.vector_store %arg6[%c0_12, %c0_13], %15 {strides = array<i32>} : memref<16x128xf32, #tpu.memory_space<vmem>>, vector<16x128xf32>,
    } else {
    }
    return
  }
  func.func @transform_0(%arg0: i32, %arg1: i32, %arg2: i32) -> (i32, i32) {
    %c0_i32 = arith.constant 0 : i32
    return %arg0, %arg2 : i32, i32
  }
  func.func @transform_1(%arg0: i32, %arg1: i32, %arg2: i32) -> (i32, i32) {
    %c0_i32 = arith.constant 0 : i32
    return %arg2, %arg1 : i32, i32
  }
  func.func @transform_2(%arg0: i32, %arg1: i32, %arg2: i32) -> (i32, i32) {
    %c0_i32 = arith.constant 0 : i32
    %c0_i32_0 = arith.constant 0 : i32
    return %c0_i32, %arg1 : i32, i32
  }
  func.func @transform_3(%arg0: i32, %arg1: i32, %arg2: i32) -> (i32, i32) {
    %c0_i32 = arith.constant 0 : i32
    return %arg0, %arg1 : i32, i32
  }
}

</mosaic_0001>

<llo_original>
// kernel: tpu_custom_call.1
$region0: #{tpu_custom_call.1}
  #allocation0 [shape = 'u32[]', space=smem, size = 0x4, offset = 0x4, fixed_abs, tag = 'smem constant byte address 0x4 - core index']
  #allocation1 [shape = 'u32[144,128]{1,0:T(1,128)}', space=vmem, size = 0x12000, scoped, tag = 'internal scratch']
  %s0 = inlined_call_operand.hbm [shape: f32[16,128], index: 0, kind: input, shape index: {}]
  %s1 = inlined_call_operand.hbm [shape: f32[128,128], index: 1, kind: input, shape index: {}]
  %s2 = inlined_call_operand.vmem [shape: f32[1,128], index: 2, kind: input, shape index: {}]
  %s3 = inlined_call_operand.hbm [shape: f32[16,128], index: 3, kind: output, shape index: {}]
  %s4 = sld [smem:[#allocation0]]
  $region42: #{tpu_custom_call.1} parent=0
    _
  %s6 = ssub.s32 1, %s4
  %s7 = scalar_select 0, %s6, %s4
  $region1: #{tpu_custom_call.1} parent=0
    #allocation2 [shape = 'u8[8192]{0}', space=vmem, size = 0x2000, scoped, tag = 'input window, operand 0, single buffered']
    #allocation3 [shape = 's32[1]{0}', space=sflag, size = 0x4, scoped, tag = 'scoped memory for tpu_custom_call.1']
    #allocation4 [shape = 's32[1]{0}', space=sflag, size = 0x4, scoped, tag = 'scoped memory for tpu_custom_call.1']
    #allocation5 [shape = 'u8[65536]{0}', space=vmem, size = 0x10000, scoped, tag = 'input window, operand 1, single buffered']
    #allocation6 [shape = 's32[1]{0}', space=sflag, size = 0x4, scoped, tag = 'scoped memory for tpu_custom_call.1']
    #allocation7 [shape = 'u8[8192]{0}', space=vmem, size = 0x2000, scoped, tag = 'output window, operand 0, single buffered']
    %8 = vsyncpa [#allocation3], 0
    %9 = vsyncpa [#allocation6], 0
    %10 = vsyncpa [#allocation4], 0
    // Predicated region
    $region2: #{tpu_custom_call.1} parent=1 // pred_check
      _
    $region3: #{tpu_custom_call.1} parent=1 // pred_check_branch
      %12 = sbr.rel (0) target = $region5
    $region4: #{tpu_custom_call.1} parent=1 // pred_region
      %s14 = ssub.s32 256, 256
      %15 = vsyncadd [#allocation3], %s14
      %s16 = sshll.u32 [#allocation2], 4
      %s17 = int_to_ptr.vmem [resolvable:$true] %s16
      %22 = dma.hbm_to_vmem [thread:$0]  %s0, 256, %s17, [#allocation3], 128, 128, 8
    $region5: #{tpu_custom_call.1} parent=1 // pred_fallthru
      _
    // Predicated region
    $region6: #{tpu_custom_call.1} parent=1 // pred_check
      _
    $region7: #{tpu_custom_call.1} parent=1 // pred_check_branch
      %24 = sbr.rel (0) target = $region9
    $region8: #{tpu_custom_call.1} parent=1 // pred_region
      %s26 = ssub.s32 2048, 2048
      %27 = vsyncadd [#allocation6], %s26
      %s28 = sshll.u32 [#allocation5], 4
      %s29 = int_to_ptr.vmem [resolvable:$true] %s28
      %34 = dma.hbm_to_vmem [thread:$0]  %s1, 2048, %s29, [#allocation6], 128, 128, 8
    $region9: #{tpu_custom_call.1} parent=1 // pred_fallthru
      _
    // Predicated region
    $region10: #{tpu_custom_call.1} parent=1 // pred_check
      _
    $region11: #{tpu_custom_call.1} parent=1 // pred_check_branch
      %36 = sbr.rel (0) target = $region13
    $region12: #{tpu_custom_call.1} parent=1 // pred_region
      _
    $region13: #{tpu_custom_call.1} parent=1 // pred_fallthru
      _
    // Predicated region
    $region14: #{tpu_custom_call.1} parent=1 // pred_check
      _
    $region15: #{tpu_custom_call.1} parent=1 // pred_check_branch
      %38 = sbr.rel (0) target = $region17
    $region16: #{tpu_custom_call.1} parent=1 // pred_region
      %39 = dma.done [#allocation3], 256
    $region17: #{tpu_custom_call.1} parent=1 // pred_fallthru
      _
    // Predicated region
    $region18: #{tpu_custom_call.1} parent=1 // pred_check
      _
    $region19: #{tpu_custom_call.1} parent=1 // pred_check_branch
      %41 = sbr.rel (0) target = $region21
    $region20: #{tpu_custom_call.1} parent=1 // pred_region
      %42 = dma.done [#allocation6], 2048
    $region21: #{tpu_custom_call.1} parent=1 // pred_fallthru
      _
    %v43 = vld [vmem:[#allocation2] sm:$0xff]
    %v44 = vld [vmem:[#allocation2 + $0x8] sm:$0xff]
    %v45 = vld [vmem:[#allocation5] sm:$0xff]
    %v46 = vld [vmem:[#allocation5 + $0x8] sm:$0xff]
    %v47 = vld [vmem:[#allocation5 + $0x10] sm:$0xff]
    %v48 = vld [vmem:[#allocation5 + $0x18] sm:$0xff]
    %v49 = vld [vmem:[#allocation5 + $0x20] sm:$0xff]
    %v50 = vld [vmem:[#allocation5 + $0x28] sm:$0xff]
    %v51 = vld [vmem:[#allocation5 + $0x30] sm:$0xff]
    %v52 = vld [vmem:[#allocation5 + $0x38] sm:$0xff]
    %v53 = vld [vmem:[#allocation5 + $0x40] sm:$0xff]
    %v54 = vld [vmem:[#allocation5 + $0x48] sm:$0xff]
    %v55 = vld [vmem:[#allocation5 + $0x50] sm:$0xff]
    %v56 = vld [vmem:[#allocation5 + $0x58] sm:$0xff]
    %v57 = vld [vmem:[#allocation5 + $0x60] sm:$0xff]
    %v58 = vld [vmem:[#allocation5 + $0x68] sm:$0xff]
    %v59 = vld [vmem:[#allocation5 + $0x70] sm:$0xff]
    %v60 = vld [vmem:[#allocation5 + $0x78] sm:$0xff]
    %61 = vmatprep.subr.mxu0 0.0
    %62 = vmatpush1.msra.mxu0 %v60
    %63 = vmatprep.subr.mxu0 0.0
    %64 = vmatpush1.msra.mxu0 %v59
    %65 = vmatprep.subr.mxu0 0.0
    %66 = vmatpush1.msra.mxu0 %v58
    %67 = vmatprep.subr.mxu0 0.0
    %68 = vmatpush1.msra.mxu0 %v57
    %69 = vmatprep.subr.mxu0 0.0
    %70 = vmatpush1.msra.mxu0 %v56
    %71 = vmatprep.subr.mxu0 0.0
    %72 = vmatpush1.msra.mxu0 %v55
    %73 = vmatprep.subr.mxu0 0.0
    %74 = vmatpush1.msra.mxu0 %v54
    %75 = vmatprep.subr.mxu0 0.0
    %76 = vmatpush1.msra.mxu0 %v53
    %77 = vmatprep.subr.mxu0 0.0
    %78 = vmatpush1.msra.mxu0 %v52
    %79 = vmatprep.subr.mxu0 0.0
    %80 = vmatpush1.msra.mxu0 %v51
    %81 = vmatprep.subr.mxu0 0.0
    %82 = vmatpush1.msra.mxu0 %v50
    %83 = vmatprep.subr.mxu0 0.0
    %84 = vmatpush1.msra.mxu0 %v49
    %85 = vmatprep.subr.mxu0 0.0
    %86 = vmatpush1.msra.mxu0 %v48
    %87 = vmatprep.subr.mxu0 0.0
    %88 = vmatpush1.msra.mxu0 %v47
    %89 = vmatprep.subr.mxu0 0.0
    %90 = vmatpush1.msra.mxu0 %v46
    %91 = vmatprep.subr.mxu0 0.0
    %92 = vmatpush1.msra.mxu0 %v45
    %93 = vmatprep.subr.mxu0 0.0
    %94 = vmatpush2.msra.mxu0 0.0
    %95 = vmatprep.subr.mxu0 0.0
    %96 = vmatpush2.msra.mxu0 0.0
    %97 = vmatprep.subr.mxu0 0.0
    %98 = vmatpush2.msra.mxu0 0.0
    %99 = vmatprep.subr.mxu0 0.0
    %100 = vmatpush2.msra.mxu0 0.0
    %101 = vmatprep.subr.mxu0 0.0
    %102 = vmatpush2.msra.mxu0 0.0
    %103 = vmatprep.subr.mxu0 0.0
    %104 = vmatpush2.msra.mxu0 0.0
    %105 = vmatprep.subr.mxu0 0.0
    %106 = vmatpush2.msra.mxu0 0.0
    %107 = vmatprep.subr.mxu0 0.0
    %108 = vmatpush2.msra.mxu0 0.0
    %109 = vmatprep.subr.mxu0 0.0
    %110 = vmatpush2.msra.mxu0 0.0
    %111 = vmatprep.subr.mxu0 0.0
    %112 = vmatpush2.msra.mxu0 0.0
    %113 = vmatprep.subr.mxu0 0.0
    %114 = vmatpush2.msra.mxu0 0.0
    %115 = vmatprep.subr.mxu0 0.0
    %116 = vmatpush2.msra.mxu0 0.0
    %117 = vmatprep.subr.mxu0 0.0
    %118 = vmatpush2.msra.mxu0 0.0
    %119 = vmatprep.subr.mxu0 0.0
    %120 = vmatpush2.msra.mxu0 0.0
    %121 = vmatprep.subr.mxu0 0.0
    %122 = vmatpush2.msra.mxu0 0.0
    %123 = vmatprep.subr.mxu0 0.0
    %124 = vmatpush2.msra.mxu0 0.0
    %125 = vmatprep.mubr.f32.mxu0 0.0
    %126 = vmatmul.mubr.f32.gmra.mxu0 %v43
    %v127 = vpop.f32.mrf.mxu0
    %v128 = vadd.f32 0.0, %v127
    %v129 = vpop.f32.mrf.mxu0
    %130 = vmatprep.mubr.f32.mxu0 0.0
    %131 = vmatmul.mubr.f32.gmra.mxu0 %v44
    %v132 = vpop.f32.mrf.mxu0
    %v133 = vadd.f32 0.0, %v132
    %v134 = vpop.f32.mrf.mxu0
    %135 = vdwg.mxu0
    %p136 = scmp.eq.s32.totalorder 0, 0
    // Predicated region
    $region22: #{tpu_custom_call.1} parent=1 // pred_check
      %p137 = pneg %p136
    $region23: #{tpu_custom_call.1} parent=1 // pred_check_branch
      %139 = sbr.rel (%p137) target = $region25
    $region24: #{tpu_custom_call.1} parent=1 // pred_region
      %140 = vst [vmem:[#allocation7] sm:$0xff] %v128
      %141 = vst [vmem:[#allocation7 + $0x8] sm:$0xff] %v133
    $region25: #{tpu_custom_call.1} parent=1 // pred_fallthru
      _
    %p142 = scmp.gt.s32.totalorder 0, 0
    // Predicated region
    $region26: #{tpu_custom_call.1} parent=1 // pred_check
      %p143 = pneg %p142
    $region27: #{tpu_custom_call.1} parent=1 // pred_check_branch
      %145 = sbr.rel (%p143) target = $region29
    $region28: #{tpu_custom_call.1} parent=1 // pred_region
      %v146 = vld [vmem:[#allocation7] sm:$0xff]
      %v147 = vld [vmem:[#allocation7 + $0x8] sm:$0xff]
      %v148 = vadd.f32 %v146, %v128
      %v149 = vadd.f32 %v147, %v133
      %150 = vst [vmem:[#allocation7] sm:$0xff] %v148
      %151 = vst [vmem:[#allocation7 + $0x8] sm:$0xff] %v149
    $region29: #{tpu_custom_call.1} parent=1 // pred_fallthru
      _
    // Predicated region
    $region30: #{tpu_custom_call.1} parent=1 // pred_check
      %p152 = pneg %p136
    $region31: #{tpu_custom_call.1} parent=1 // pred_check_branch
      %154 = sbr.rel (%p152) target = $region33
    $region32: #{tpu_custom_call.1} parent=1 // pred_region
      %v155 = vld [vmem:[#allocation7] sm:$0xff]
      %v156 = vld [vmem:[#allocation7 + $0x8] sm:$0xff]
      %v157 = vld [vmem:[%s2] sm:$0x1]
      %v159 = vlaneseq
      %v160 = vshrl.u32 %v159, 7
      %v161 = vsub.s32 0, %v160
      %v162 = vrot.slane %v157, %v161
      %v164 = vadd.f32 %v155, %v162
      %v165 = vadd.f32 %v156, %v162
      %166 = vst [vmem:[#allocation7] sm:$0xff] %v164
      %167 = vst [vmem:[#allocation7 + $0x8] sm:$0xff] %v165
    $region33: #{tpu_custom_call.1} parent=1 // pred_fallthru
      _
    // Predicated region
    $region34: #{tpu_custom_call.1} parent=1 // pred_check
      _
    $region35: #{tpu_custom_call.1} parent=1 // pred_check_branch
      %169 = sbr.rel (0) target = $region37
    $region36: #{tpu_custom_call.1} parent=1 // pred_region
      %s171 = ssub.s32 256, 256
      %172 = vsyncadd [#allocation4], %s171
      %s173 = sshll.u32 [#allocation7], 4
      %s174 = int_to_ptr.vmem [resolvable:$true] %s173
      %179 = dma.vmem_to_hbm [thread:$0]  %s174, 256, %s3, [#allocation4], 128, 128, 8
    $region37: #{tpu_custom_call.1} parent=1 // pred_fallthru
      _
    // Predicated region
    $region38: #{tpu_custom_call.1} parent=1 // pred_check
      _
    $region39: #{tpu_custom_call.1} parent=1 // pred_check_branch
      %181 = sbr.rel (0) target = $region41
    $region40: #{tpu_custom_call.1} parent=1 // pred_region
      %182 = dma.done [#allocation4], 256
    $region41: #{tpu_custom_call.1} parent=1 // pred_fallthru
      _
    %183 = vsyncpa [#allocation3], 1
    %184 = vsyncpa [#allocation6], 1
    %185 = vsyncpa [#allocation4], 1

</llo_original>
